<compile_context>
chip_gen: v7x
topology: tpu7x:2x2x1
jax: 0.10.0
libtpu: 0.0.40
codegen_flags: <defaults>
</compile_context>

<pallas_src>
import jax
import jax.numpy as jnp
from jax.experimental import pallas as pl
from jax.experimental.pallas import tpu as pltpu


# ----------------------------- small helpers --------------------------------

def _round_up(x, m):
    return ((x + m - 1) // m) * m


def _vmem_cap_bytes():
    """Generation-aware scoped-VMEM cap (leave headroom for Mosaic scratch)."""
    cap = 64 * 1024 * 1024                       # conservative default (v7x physical)
    try:
        info = pltpu.get_tpu_info()
        cap = int(getattr(info, "vmem_capacity_bytes", cap))
    except Exception:
        pass
    # 128-MiB parts (v5e/v6e) -> ~108 MiB budget; v7x (64 MiB) -> ~54 MiB.
    return max(32 * 1024 * 1024, int(cap * 0.85))


def _vmem_limit(need_bytes, cap):
    return int(min(cap, max(4 * 1024 * 1024, 2 * need_bytes)))


def _prop_need_bytes(tm, tk, n_pad, h_pad):
    return (2 * tm * tk                  # int8 Â tile, double-buffered
            + 2 * n_pad * h_pad * 2      # resident Y (bf16), 2 buffers
            + 2 * tm * h_pad * 2         # output tile (bf16)
            + tm * h_pad * 4             # f32 accumulator
            + 2 * h_pad * h_pad * 2      # resident W_next (bf16)
            + 2 * (tm + h_pad) * 4)      # dinv rows + bias


def _select_tiles(n_pad, h_pad, cap):
    """Largest (tm, tk) divisor tiles of n_pad whose propagate footprint fits."""
    tm_cands = [t for t in (1024, 512, 256, 128) if n_pad % t == 0] or [n_pad]
    tk_cands = [t for t in (2048, 1024, 512, 256, 128) if n_pad % t == 0] or [n_pad]
    # Prefer >=2 row tiles so v7x's two TensorCores both get work.
    tm_pref = [t for t in tm_cands if n_pad // t >= 2] or tm_cands
    for tm in tm_pref:
        for tk in tk_cands:
            if 2 * _prop_need_bytes(tm, tk, n_pad, h_pad) <= cap:
                return tm, tk
    return tm_cands[-1], tk_cands[-1]


# ------------------------------- kernels -------------------------------------

def _xw_scaled_kernel(x_ref, w_ref, dinv_ref, y_ref):
    """Y[i] = dinv[i] * (X[i] @ W)   (bf16 out, f32 MXU accumulation)."""
    y = jnp.dot(x_ref[...], w_ref[...], preferred_element_type=jnp.float32)
    y_ref[...] = (y * dinv_ref[...]).astype(y_ref.dtype)


def _make_propagate_kernel(tk, fuse_next):
    """H[i] = relu(dinv[i] * sum_k A[i,k] @ Y[k] + b); optionally fused @W_next.

    A is int8 (cast to bf16 in-kernel), Y is VMEM-resident and sliced with
    pl.ds (no re-streaming per row tile).  grid = (row_tiles, k_tiles).
    """
    def kernel(a_ref, y_ref, dinv_ref, b_ref, *rest):
        if fuse_next:
            wn_ref, out_ref, acc_ref = rest
        else:
            out_ref, acc_ref = rest
        k = pl.program_id(1)

        @pl.when(k == 0)
        def _():
            acc_ref[...] = jnp.zeros_like(acc_ref)

        start = pl.multiple_of(k * tk, tk)
        y_blk = y_ref[pl.ds(start, tk), :]          # resident Y: slice, no DMA
        a_blk = a_ref[...].astype(jnp.bfloat16)     # int8->bf16 rides idle VPU
        acc_ref[...] += jnp.dot(a_blk, y_blk, preferred_element_type=jnp.float32)

        @pl.when(k == pl.num_programs(1) - 1)
        def _():
            # Fold D^-1/2 row scaling + bias + ReLU into the f32 epilogue.
            h = jnp.maximum(dinv_ref[...] * acc_ref[...] + b_ref[...], 0.0)
            if fuse_next:
                y_next = jnp.dot(h.astype(jnp.bfloat16), wn_ref[...],
                                 preferred_element_type=jnp.float32)
                out_ref[...] = (y_next * dinv_ref[...]).astype(out_ref.dtype)
            else:
                out_ref[...] = h.astype(out_ref.dtype)

    return kernel


def _readout_head_kernel(p_ref, h_ref, w1_ref, b1_ref, w2_ref, b2_ref,
                         o_ref, acc_ref):
    """pooled = sum_k P[:,k] @ H[k] (f32); projection head runs once at the end."""
    k = pl.program_id(0)

    @pl.when(k == 0)
    def _():
        acc_ref[...] = jnp.zeros_like(acc_ref)

    acc_ref[...] += jnp.dot(p_ref[...], h_ref[...].astype(jnp.float32),
                            preferred_element_type=jnp.float32)

    @pl.when(k == pl.num_programs(0) - 1)
    def _():
        g = acc_ref[...]                                    # [G_pad, H_pad] f32
        z = jnp.dot(g, w1_ref[...], preferred_element_type=jnp.float32) + b1_ref[...]
        z = jnp.maximum(z, 0.0)
        o_ref[...] = (jnp.dot(z, w2_ref[...], preferred_element_type=jnp.float32)
                      + b2_ref[...])


# --------------------------- pallas_call wrappers -----------------------------

def _feature_transform(x_bf16, w_bf16, dinv_f32, *, tm, cap):
    n_pad, f_in = x_bf16.shape
    f_out = w_bf16.shape[1]
    need = 2 * (tm * f_in * 2 + f_in * f_out * 2 + tm * f_out * 2 + tm * 4)
    cost = pl.CostEstimate(
        flops=2 * n_pad * f_in * f_out, transcendentals=0,
        bytes_accessed=2 * (n_pad * f_in + f_in * f_out + n_pad * f_out) + 4 * n_pad)
    return pl.pallas_call(
        _xw_scaled_kernel,
        out_shape=jax.ShapeDtypeStruct((n_pad, f_out), jnp.bfloat16),
        grid_spec=pltpu.PrefetchScalarGridSpec(
            num_scalar_prefetch=0,
            grid=(n_pad // tm,),
            in_specs=[pl.BlockSpec((tm, f_in), lambda i: (i, 0)),
                      pl.BlockSpec((f_in, f_out), lambda i: (0, 0)),
                      pl.BlockSpec((tm, 1), lambda i: (i, 0))],
            out_specs=pl.BlockSpec((tm, f_out), lambda i: (i, 0))),
        compiler_params=pltpu.CompilerParams(
            dimension_semantics=("parallel",),
            vmem_limit_bytes=_vmem_limit(need, cap)),
        cost_estimate=cost,
    )(x_bf16, w_bf16, dinv_f32)


def _propagate(a_i8, y_bf16, dinv_f32, b_f32, w_next=None, *, tm, tk, cap):
    n_pad = a_i8.shape[0]
    h_pad = y_bf16.shape[1]
    fuse = w_next is not None
    out_w = w_next.shape[1] if fuse else h_pad

    kernel = _make_propagate_kernel(tk, fuse)
    in_specs = [pl.BlockSpec((tm, tk), lambda i, k: (i, k)),         # A int8 tile
                pl.BlockSpec((n_pad, h_pad), lambda i, k: (0, 0)),   # Y resident
                pl.BlockSpec((tm, 1), lambda i, k: (i, 0)),          # dinv rows
                pl.BlockSpec((1, h_pad), lambda i, k: (0, 0))]       # bias
    operands = [a_i8, y_bf16, dinv_f32, b_f32]
    if fuse:
        in_specs.append(pl.BlockSpec((h_pad, out_w), lambda i, k: (0, 0)))
        operands.append(w_next)

    flops = 2 * n_pad * n_pad * h_pad + (2 * n_pad * h_pad * out_w if fuse else 0)
    bytes_accessed = (n_pad * n_pad                 # A (int8, read once)
                      + n_pad * h_pad * 2           # Y (resident, read once)
                      + n_pad * out_w * 2           # output
                      + n_pad * 4 + h_pad * 4
                      + (h_pad * out_w * 2 if fuse else 0))
    need = _prop_need_bytes(tm, tk, n_pad, h_pad) + (2 * h_pad * out_w * 2 if fuse else 0)

    return pl.pallas_call(
        kernel,
        out_shape=jax.ShapeDtypeStruct((n_pad, out_w), jnp.bfloat16),
        grid_spec=pltpu.PrefetchScalarGridSpec(
            num_scalar_prefetch=0,
            grid=(n_pad // tm, n_pad // tk),          # reduction (k) axis last
            in_specs=in_specs,
            out_specs=pl.BlockSpec((tm, out_w), lambda i, k: (i, 0)),
            scratch_shapes=[pltpu.VMEM((tm, h_pad), jnp.float32)]),
        compiler_params=pltpu.CompilerParams(
            dimension_semantics=("parallel", "arbitrary"),
            vmem_limit_bytes=_vmem_limit(need, cap)),
        cost_estimate=pl.CostEstimate(flops=flops, transcendentals=0,
                                      bytes_accessed=bytes_accessed),
    )(*operands)


def _readout_and_head(pool_f32, h_bf16, pw1, pb1, pw2, pb2, *, tk, cap):
    g_pad, n_pad = pool_f32.shape
    h_pad = h_bf16.shape[1]
    o_pad = pw2.shape[1]
    need = (2 * g_pad * tk * 4 + 2 * tk * h_pad * 2
            + h_pad * h_pad * 4 + h_pad * 4 + h_pad * o_pad * 4 + o_pad * 4
            + 2 * g_pad * o_pad * 4 + g_pad * h_pad * 4)
    return pl.pallas_call(
        _readout_head_kernel,
        out_shape=jax.ShapeDtypeStruct((g_pad, o_pad), jnp.float32),
        grid_spec=pltpu.PrefetchScalarGridSpec(
            num_scalar_prefetch=0,
            grid=(n_pad // tk,),
            in_specs=[pl.BlockSpec((g_pad, tk), lambda k: (0, k)),
                      pl.BlockSpec((tk, h_pad), lambda k: (k, 0)),
                      pl.BlockSpec((h_pad, h_pad), lambda k: (0, 0)),
                      pl.BlockSpec((1, h_pad), lambda k: (0, 0)),
                      pl.BlockSpec((h_pad, o_pad), lambda k: (0, 0)),
                      pl.BlockSpec((1, o_pad), lambda k: (0, 0))],
            out_specs=pl.BlockSpec((g_pad, o_pad), lambda k: (0, 0)),
            scratch_shapes=[pltpu.VMEM((g_pad, h_pad), jnp.float32)]),
        compiler_params=pltpu.CompilerParams(
            dimension_semantics=("arbitrary",),
            vmem_limit_bytes=_vmem_limit(need, cap)),
    )(pool_f32, h_bf16, pw1, pb1, pw2, pb2)


# ----------------------------- graph glue (JAX) -------------------------------

def build_adj_and_dinv(edge_index, num_nodes):
    """A(+I) as int8 ({0,1,2} entries) and dinv = deg^-1/2 in f32 (gcn_norm).

    Â = D^-1/2 (A+I) D^-1/2 is never materialized; the kernels fold the dinv
    scaling into the Y row pre-scale and the f32 epilogue (saves several
    N^2-sized f32/bf16 HBM round trips and halves the Â stream vs bf16).
    """
    src, dst = edge_index[0], edge_index[1]
    a = jnp.zeros((num_nodes, num_nodes), jnp.int8)
    a = a.at[dst, src].add(jnp.ones_like(src, jnp.int8))
    a = a + jnp.eye(num_nodes, dtype=jnp.int8)
    deg = jnp.sum(a.astype(jnp.float32), axis=1)
    dinv = jnp.where(deg > 0, 1.0 / jnp.sqrt(deg), 0.0).astype(jnp.float32)
    return a, dinv


def build_mean_pool(batch, num_graphs, num_nodes):
    """[G, N] f32 matrix: row g has 1/|nodes in g| on the nodes of graph g."""
    onehot = (batch[None, :] == jnp.arange(num_graphs)[:, None]).astype(jnp.float32)
    counts = onehot.sum(axis=1, keepdims=True)
    return onehot / jnp.maximum(counts, 1.0)


# ------------------------------ forward pass ----------------------------------

def gnn_encoder_gcn(x, edge_index, batch, params, num_graphs):
    """Forward pass of GNNEncoderGCN (num_layers=2, readout='mean', eval mode)."""
    n, f = x.shape
    (w1, b1, w2, b2, pw1, pb1, pw2, pb2) = params
    hidden = w1.shape[1]
    out_dim = pw2.shape[1]

    a_i8, dinv = build_adj_and_dinv(edge_index, n)
    pool = build_mean_pool(batch, num_graphs, n)        # stays f32 (accuracy)

    # TODO(synk): exploit the per-graph block-diagonal structure of A (grid over
    # graphs with scalar-prefetched node offsets) to skip structural-zero tiles;
    # the dense tiled form below is kept for generality.

    # Pad: lanes to 128, nodes to a tile-friendly multiple, graphs to 8 sublanes.
    f_pad = _round_up(f, 128)
    h_pad = _round_up(hidden, 128)
    o_pad = _round_up(out_dim, 128)
    g_pad = _round_up(num_graphs, 8)
    n_pad = _round_up(n, 128)
    if n_pad >= 2048:
        n_pad = _round_up(n, 1024)
    elif n_pad >= 512:
        n_pad = _round_up(n, 512)

    cap = _vmem_cap_bytes()
    tm, tk = _select_tiles(n_pad, h_pad, cap)

    def pad2(m, r, c):
        return jnp.pad(m, ((0, r - m.shape[0]), (0, c - m.shape[1])))

    bf = jnp.bfloat16
    a_p = pad2(a_i8, n_pad, n_pad)                      # int8 (1 byte/entry)
    x_p = pad2(x, n_pad, f_pad).astype(bf)
    dinv_p = pad2(dinv[:, None], n_pad, 1)              # f32 row scales
    pool_p = pad2(pool, g_pad, n_pad)                   # f32
    w1_p, b1_p = pad2(w1, f_pad, h_pad).astype(bf), pad2(b1, 1, h_pad)
    w2_p, b2_p = pad2(w2, h_pad, h_pad).astype(bf), pad2(b2, 1, h_pad)
    pw1_p, pb1_p = pad2(pw1, h_pad, h_pad), pad2(pb1, 1, h_pad)   # head stays f32
    pw2_p, pb2_p = pad2(pw2, h_pad, o_pad), pad2(pb2, 1, o_pad)

    # Layer 1 feature transform with D^-1/2 pre-scaling: y1 = dinv * (X @ W1).
    y1 = _feature_transform(x_p, w1_p, dinv_p, tm=tm, cap=cap)
    # Layer 1 propagate, fused with layer-2's feature transform:
    #   h1 = relu(dinv*(A@y1) + b1);  y2 = dinv * (h1 @ W2)
    # (dropout == identity in eval mode; padded rows only see zero A/pool cols)
    y2 = _propagate(a_p, y1, dinv_p, b1_p, w2_p, tm=tm, tk=tk, cap=cap)
    # Layer 2 propagate: h2 = relu(dinv*(A@y2) + b2).
    h2 = _propagate(a_p, y2, dinv_p, b2_p, tm=tm, tk=tk, cap=cap)
    # Mean readout (f32 pool) + projection head fused into the last K step.
    out = _readout_and_head(pool_p, h2, pw1_p, pb1_p, pw2_p, pb2_p, tk=tk, cap=cap)
    return out[:num_graphs, :out_dim]


# ------------------------------ reference / init ------------------------------

def reference_forward(x, edge_index, batch, params, num_graphs):
    """Pure-JAX f32 reference with identical semantics."""
    w1, b1, w2, b2, pw1, pb1, pw2, pb2 = params
    n = x.shape[0]
    src, dst = edge_index[0], edge_index[1]
    a = jnp.zeros((n, n), jnp.float32).at[dst, src].add(1.0) + jnp.eye(n)
    deg = a.sum(axis=1)
    dinv = jnp.where(deg > 0, 1.0 / jnp.sqrt(deg), 0.0)
    a_hat = dinv[:, None] * a * dinv[None, :]
    p = build_mean_pool(batch, num_graphs, n)
    h = jnp.maximum(a_hat @ (x @ w1) + b1, 0.0)
    h = jnp.maximum(a_hat @ (h @ w2) + b2, 0.0)
    g = p @ h
    z = jnp.maximum(g @ pw1 + pb1, 0.0)
    return z @ pw2 + pb2


def init_params(key, input_dim, hidden_dim, output_dim):
    """Deterministic synthetic weights (same shapes as the PyTorch module)."""
    ks = jax.random.split(key, 8)

    def glorot(k, shape):
        fan_in, fan_out = shape
        scale = jnp.sqrt(6.0 / (fan_in + fan_out))
        return jax.random.uniform(k, shape, jnp.float32, -scale, scale)

    w1 = glorot(ks[0], (input_dim, hidden_dim))     # GCNConv 1 weight
    b1 = jnp.zeros((1, hidden_dim), jnp.float32)    # GCNConv 1 bias
    w2 = glorot(ks[1], (hidden_dim, hidden_dim))    # GCNConv 2 weight
    b2 = jnp.zeros((1, hidden_dim), jnp.float32)    # GCNConv 2 bias
    pw1 = glorot(ks[2], (hidden_dim, hidden_dim))   # projection Linear 1
    pb1 = 0.01 * jax.random.normal(ks[3], (1, hidden_dim), jnp.float32)
    pw2 = glorot(ks[4], (hidden_dim, output_dim))   # projection Linear 2
    pb2 = 0.01 * jax.random.normal(ks[5], (1, output_dim), jnp.float32)
    return (w1, b1, w2, b2, pw1, pb1, pw2, pb2)


if __name__ == "__main__":
    key = jax.random.PRNGKey(0)
    k_x, k_e, k_p = jax.random.split(key, 3)

    # Small synthetic graph batch: 2 graphs, 8 nodes each (N=16 total).
    N, INPUT_DIM, HIDDEN_DIM, OUTPUT_DIM, NUM_GRAPHS = 16, 8, 32, 16, 2

    x = jax.random.normal(k_x, (N, INPUT_DIM), jnp.float32)
    # Ring edges within each graph (both directions), kept inside graph blocks.
    src = jnp.concatenate([jnp.arange(8), jnp.arange(8, 16)])
    dst = jnp.concatenate([(jnp.arange(8) + 1) % 8, 8 + (jnp.arange(8) + 1) % 8])
    edge_index = jnp.stack(
        [jnp.concatenate([src, dst]), jnp.concatenate([dst, src])]
    ).astype(jnp.int32)                                   # [2, E], undirected
    batch = jnp.concatenate(
        [jnp.zeros(8, jnp.int32), jnp.ones(8, jnp.int32)]
    )                                                     # node -> graph id

    params = init_params(k_p, INPUT_DIM, HIDDEN_DIM, OUTPUT_DIM)

    # TODO(synk): dropout implemented as identity (eval mode); training-mode
    # stochastic masking would need pltpu.prng_* inside the kernels.
    out = gnn_encoder_gcn(x, edge_index, batch, params, NUM_GRAPHS)
    jax.block_until_ready(out)
    assert out.shape == (NUM_GRAPHS, OUTPUT_DIM)

    ref = reference_forward(x, edge_index, batch, params, NUM_GRAPHS)
    assert bool(jnp.all(jnp.isfinite(out)))
    assert bool(jnp.allclose(out, ref, rtol=5e-2, atol=5e-2)), (
        f"max abs diff {float(jnp.max(jnp.abs(out - ref)))}")
    print("KERNEL_OK")
</pallas_src>

<mosaic_0001>
module attributes {stable_mosaic.version = 11 : i64} {
  func.func @_xw_scaled_kernel(%arg0: i32, %arg1: memref<128x128xbf16, #tpu.memory_space<vmem>>, %arg2: memref<128x128xbf16, #tpu.memory_space<vmem>>, %arg3: memref<128x1xf32, #tpu.memory_space<vmem>>, %arg4: memref<128x128xbf16, #tpu.memory_space<vmem>>) attributes {dimension_semantics = [#tpu.dimension_semantics<parallel>], iteration_bounds = array<i64: 1>, scalar_prefetch = 0 : i64, scratch_operands = 0 : i64, tpu.core_type = #tpu.core_type<tc>, window_params = [{transform_indices = @transform_0, window_bounds = array<i64: 128, 128>}, {pipeline_mode = #tpu.pipeline_mode<synchronous>, transform_indices = @transform_1, window_bounds = array<i64: 128, 128>}, {transform_indices = @transform_2, window_bounds = array<i64: 128, 1>}, {transform_indices = @transform_3, window_bounds = array<i64: 128, 128>}]} {
    %c0 = arith.constant 0 : index
    %c0_0 = arith.constant 0 : index
    %0 = vector.load %arg1[%c0, %c0_0] : memref<128x128xbf16, #tpu.memory_space<vmem>>, vector<128x128xbf16>
    %c0_1 = arith.constant 0 : index
    %c0_2 = arith.constant 0 : index
    %1 = vector.load %arg2[%c0_1, %c0_2] : memref<128x128xbf16, #tpu.memory_space<vmem>>, vector<128x128xbf16>
    %cst = arith.constant dense<0.000000e+00> : vector<128x128xf32>
    %2 = tpu.matmul %0, %1, %cst {dimension_numbers = #tpu.dot_dimension_numbers<[1], [0], [0], [1], [0, 0, 1, 1], [], []>} : vector<128x128xbf16>, vector<128x128xbf16>, vector<128x128xf32> -> vector<128x128xf32>
    %c0_3 = arith.constant 0 : index
    %c0_4 = arith.constant 0 : index
    %3 = vector.load %arg3[%c0_3, %c0_4] : memref<128x1xf32, #tpu.memory_space<vmem>>, vector<128x1xf32>
    %4 = vector.broadcast %3 : vector<128x1xf32> to vector<128x128xf32>
    %5 = arith.mulf %2, %4 : vector<128x128xf32>
    %6 = arith.truncf %5 : vector<128x128xf32> to vector<128x128xbf16>
    %c0_5 = arith.constant 0 : index
    %c0_6 = arith.constant 0 : index
    %7 = vector.load %arg4[%c0_5, %c0_6] : memref<128x128xbf16, #tpu.memory_space<vmem>>, vector<128x128xbf16>
    tpu.vector_store %arg4[%c0_5, %c0_6], %6 {strides = array<i32>} : memref<128x128xbf16, #tpu.memory_space<vmem>>, vector<128x128xbf16>,
    return
  }
  func.func @transform_0(%arg0: i32) -> (i32, i32) {
    %c0_i32 = arith.constant 0 : i32
    %c0_i32_0 = arith.constant 0 : i32
    return %arg0, %c0_i32 : i32, i32
  }
  func.func @transform_1(%arg0: i32) -> (i32, i32) {
    %c0_i32 = arith.constant 0 : i32
    %c0_i32_0 = arith.constant 0 : i32
    %c0_i32_1 = arith.constant 0 : i32
    return %c0_i32, %c0_i32_0 : i32, i32
  }
  func.func @transform_2(%arg0: i32) -> (i32, i32) {
    %c0_i32 = arith.constant 0 : i32
    %c0_i32_0 = arith.constant 0 : i32
    return %arg0, %c0_i32 : i32, i32
  }
  func.func @transform_3(%arg0: i32) -> (i32, i32) {
    %c0_i32 = arith.constant 0 : i32
    %c0_i32_0 = arith.constant 0 : i32
    return %arg0, %c0_i32 : i32, i32
  }
}

</mosaic_0001>

<llo_original>
// kernel: tpu_custom_call.1
$region0: #{tpu_custom_call.1}
  #allocation0 [shape = 'u32[]', space=smem, size = 0x4, offset = 0x4, fixed_abs, tag = 'smem constant byte address 0x4 - core index']
  #allocation1 [shape = 'u32[144,128]{1,0:T(1,128)}', space=vmem, size = 0x12000, scoped, tag = 'internal scratch']
  %s0 = inlined_call_operand.vmem [shape: bf16[128,128], index: 0, kind: input, shape index: {}]
  %s1 = inlined_call_operand.vmem [shape: bf16[128,128], index: 1, kind: input, shape index: {}]
  %s2 = inlined_call_operand.vmem [shape: f32[128,1], index: 2, kind: input, shape index: {}]
  %s3 = inlined_call_operand.hbm [shape: bf16[128,128], index: 3, kind: output, shape index: {}]
  %s4 = sld [smem:[#allocation0]]
  $region22: #{tpu_custom_call.1} parent=0
    _
  %s6 = ssub.s32 1, %s4
  %s7 = scalar_select 0, %s6, %s4
  $region1: #{tpu_custom_call.1} parent=0
    #allocation2 [shape = 'u8[32768]{0}', space=vmem, size = 0x8000, scoped, tag = 'output window, operand 0, single buffered']
    #allocation3 [shape = 's32[1]{0}', space=sflag, size = 0x4, scoped, tag = 'scoped memory for tpu_custom_call.1']
    %8 = vsyncpa [#allocation3], 0
    // Predicated region
    $region2: #{tpu_custom_call.1} parent=1 // pred_check
      _
    $region3: #{tpu_custom_call.1} parent=1 // pred_check_branch
      %10 = sbr.rel (0) target = $region5
    $region4: #{tpu_custom_call.1} parent=1 // pred_region
      _
    $region5: #{tpu_custom_call.1} parent=1 // pred_fallthru
      _
    // Predicated region
    $region6: #{tpu_custom_call.1} parent=1 // pred_check
      _
    $region7: #{tpu_custom_call.1} parent=1 // pred_check_branch
      %12 = sbr.rel (0) target = $region9
    $region8: #{tpu_custom_call.1} parent=1 // pred_region
      _
    $region9: #{tpu_custom_call.1} parent=1 // pred_fallthru
      _
    // Predicated region
    $region10: #{tpu_custom_call.1} parent=1 // pred_check
      _
    $region11: #{tpu_custom_call.1} parent=1 // pred_check_branch
      %14 = sbr.rel (0) target = $region13
    $region12: #{tpu_custom_call.1} parent=1 // pred_region
      _
    $region13: #{tpu_custom_call.1} parent=1 // pred_fallthru
      _
    %v16 = vld [vmem:[%s0] sm:$0xf]
    %v17 = vld [vmem:[%s0 + $0x4] sm:$0xf]
    %v18 = vld [vmem:[%s0 + $0x8] sm:$0xf]
    %v19 = vld [vmem:[%s0 + $0xc] sm:$0xf]
    %v20 = vld [vmem:[%s0 + $0x10] sm:$0xf]
    %v21 = vld [vmem:[%s0 + $0x14] sm:$0xf]
    %v22 = vld [vmem:[%s0 + $0x18] sm:$0xf]
    %v23 = vld [vmem:[%s0 + $0x1c] sm:$0xf]
    %v24 = vld [vmem:[%s0 + $0x20] sm:$0xf]
    %v25 = vld [vmem:[%s0 + $0x24] sm:$0xf]
    %v26 = vld [vmem:[%s0 + $0x28] sm:$0xf]
    %v27 = vld [vmem:[%s0 + $0x2c] sm:$0xf]
    %v28 = vld [vmem:[%s0 + $0x30] sm:$0xf]
    %v29 = vld [vmem:[%s0 + $0x34] sm:$0xf]
    %v30 = vld [vmem:[%s0 + $0x38] sm:$0xf]
    %v31 = vld [vmem:[%s0 + $0x3c] sm:$0xf]
    %v32 = vld [vmem:[%s1] sm:$0xf]
    %v33 = vld [vmem:[%s1 + $0x4] sm:$0xf]
    %v34 = vld [vmem:[%s1 + $0x8] sm:$0xf]
    %v35 = vld [vmem:[%s1 + $0xc] sm:$0xf]
    %v36 = vld [vmem:[%s1 + $0x10] sm:$0xf]
    %v37 = vld [vmem:[%s1 + $0x14] sm:$0xf]
    %v38 = vld [vmem:[%s1 + $0x18] sm:$0xf]
    %v39 = vld [vmem:[%s1 + $0x1c] sm:$0xf]
    %v40 = vld [vmem:[%s1 + $0x20] sm:$0xf]
    %v41 = vld [vmem:[%s1 + $0x24] sm:$0xf]
    %v42 = vld [vmem:[%s1 + $0x28] sm:$0xf]
    %v43 = vld [vmem:[%s1 + $0x2c] sm:$0xf]
    %v44 = vld [vmem:[%s1 + $0x30] sm:$0xf]
    %v45 = vld [vmem:[%s1 + $0x34] sm:$0xf]
    %v46 = vld [vmem:[%s1 + $0x38] sm:$0xf]
    %v47 = vld [vmem:[%s1 + $0x3c] sm:$0xf]
    %v64 = vunpack.c.l.b16 %v16
    %v65 = vunpack.c.l.b16 %v17
    %v66 = vunpack.c.l.b16 %v18
    %v67 = vunpack.c.l.b16 %v19
    %v68 = vunpack.c.l.b16 %v20
    %v69 = vunpack.c.l.b16 %v21
    %v70 = vunpack.c.l.b16 %v22
    %v71 = vunpack.c.l.b16 %v23
    %v72 = vunpack.c.l.b16 %v24
    %v73 = vunpack.c.l.b16 %v25
    %v74 = vunpack.c.l.b16 %v26
    %v75 = vunpack.c.l.b16 %v27
    %v76 = vunpack.c.l.b16 %v28
    %v77 = vunpack.c.l.b16 %v29
    %v78 = vunpack.c.l.b16 %v30
    %v79 = vunpack.c.l.b16 %v31
    %v80 = vpack.c.b16 %v65, %v64
    %v81 = vpack.c.b16 %v67, %v66
    %v82 = vpack.c.b16 %v69, %v68
    %v83 = vpack.c.b16 %v71, %v70
    %v84 = vpack.c.b16 %v73, %v72
    %v85 = vpack.c.b16 %v75, %v74
    %v86 = vpack.c.b16 %v77, %v76
    %v87 = vpack.c.b16 %v79, %v78
    %v112 = vunpack.c.l.b16 %v32
    %v113 = vunpack.c.l.b16 %v33
    %v114 = vunpack.c.l.b16 %v34
    %v115 = vunpack.c.l.b16 %v35
    %v116 = vunpack.c.l.b16 %v36
    %v117 = vunpack.c.l.b16 %v37
    %v118 = vunpack.c.l.b16 %v38
    %v119 = vunpack.c.l.b16 %v39
    %v120 = vunpack.c.l.b16 %v40
    %v121 = vunpack.c.l.b16 %v41
    %v122 = vunpack.c.l.b16 %v42
    %v123 = vunpack.c.l.b16 %v43
    %v124 = vunpack.c.l.b16 %v44
    %v125 = vunpack.c.l.b16 %v45
    %v126 = vunpack.c.l.b16 %v46
    %v127 = vunpack.c.l.b16 %v47
    %v128 = vpack.c.b16 %v113, %v112
    %v129 = vpack.c.b16 %v115, %v114
    %v130 = vpack.c.b16 %v117, %v116
    %v131 = vpack.c.b16 %v119, %v118
    %v132 = vpack.c.b16 %v121, %v120
    %v133 = vpack.c.b16 %v123, %v122
    %v134 = vpack.c.b16 %v125, %v124
    %v135 = vpack.c.b16 %v127, %v126
    %144 = vmatprep.subr.bf16.mxu0 0
    %145 = vmatpush1.bf16.msra.mxu0 %v128
    %146 = vmatprep.subr.bf16.mxu0 0
    %147 = vmatpush1.bf16.msra.mxu0 %v129
    %148 = vmatprep.subr.bf16.mxu0 0
    %149 = vmatpush1.bf16.msra.mxu0 %v130
    %150 = vmatprep.subr.bf16.mxu0 0
    %151 = vmatpush1.bf16.msra.mxu0 %v131
    %152 = vmatprep.subr.bf16.mxu0 0
    %153 = vmatpush1.bf16.msra.mxu0 %v132
    %154 = vmatprep.subr.bf16.mxu0 0
    %155 = vmatpush1.bf16.msra.mxu0 %v133
    %156 = vmatprep.subr.bf16.mxu0 0
    %157 = vmatpush1.bf16.msra.mxu0 %v134
    %158 = vmatprep.subr.bf16.mxu0 0
    %159 = vmatpush1.bf16.msra.mxu0 %v135
    %160 = vmatprep.subr.bf16.mxu0 0
    %161 = vmatpush1.bf16.msra.mxu0 0
    %162 = vmatprep.subr.bf16.mxu0 0
    %163 = vmatpush1.bf16.msra.mxu0 0
    %164 = vmatprep.subr.bf16.mxu0 0
    %165 = vmatpush1.bf16.msra.mxu0 0
    %166 = vmatprep.subr.bf16.mxu0 0
    %167 = vmatpush1.bf16.msra.mxu0 0
    %168 = vmatprep.subr.bf16.mxu0 0
    %169 = vmatpush1.bf16.msra.mxu0 0
    %170 = vmatprep.subr.bf16.mxu0 0
    %171 = vmatpush1.bf16.msra.mxu0 0
    %172 = vmatprep.subr.bf16.mxu0 0
    %173 = vmatpush1.bf16.msra.mxu0 0
    %174 = vmatprep.subr.bf16.mxu0 0
    %175 = vmatpush1.bf16.msra.mxu0 0
    %176 = vmatprep.mubr.bf16.mxu0 0
    %177 = vmatmul.mubr.bf16.gmra.mrb[0].mxu0 %v80
    %v178 = vpop.f32.mrb[0].mxu0
    %v179 = vadd.f32 0.0, %v178
    %v180 = vpop.f32.mrb[0].mxu0
    %v181 = vpop.f32.mrb[0].mxu0
    %v182 = vadd.f32 0.0, %v181
    %v183 = vpop.f32.mrb[0].mxu0
    %184 = vmatprep.mubr.bf16.mxu0 0
    %185 = vmatmul.mubr.bf16.gmra.mrb[0].mxu0 %v81
    %v186 = vpop.f32.mrb[0].mxu0
    %v187 = vadd.f32 0.0, %v186
    %v188 = vpop.f32.mrb[0].mxu0
    %v189 = vpop.f32.mrb[0].mxu0
    %v190 = vadd.f32 0.0, %v189
    %v191 = vpop.f32.mrb[0].mxu0
    %192 = vmatprep.mubr.bf16.mxu0 0
    %193 = vmatmul.mubr.bf16.gmra.mrb[0].mxu0 %v82
    %v194 = vpop.f32.mrb[0].mxu0
    %v195 = vadd.f32 0.0, %v194
    %v196 = vpop.f32.mrb[0].mxu0
    %v197 = vpop.f32.mrb[0].mxu0
    %v198 = vadd.f32 0.0, %v197
    %v199 = vpop.f32.mrb[0].mxu0
    %200 = vmatprep.mubr.bf16.mxu0 0
    %201 = vmatmul.mubr.bf16.gmra.mrb[0].mxu0 %v83
    %v202 = vpop.f32.mrb[0].mxu0
    %v203 = vadd.f32 0.0, %v202
    %v204 = vpop.f32.mrb[0].mxu0
    %v205 = vpop.f32.mrb[0].mxu0
    %v206 = vadd.f32 0.0, %v205
    %v207 = vpop.f32.mrb[0].mxu0
    %208 = vmatprep.mubr.bf16.mxu0 0
    %209 = vmatmul.mubr.bf16.gmra.mrb[0].mxu0 %v84
    %v210 = vpop.f32.mrb[0].mxu0
    %v211 = vadd.f32 0.0, %v210
    %v212 = vpop.f32.mrb[0].mxu0
    %v213 = vpop.f32.mrb[0].mxu0
    %v214 = vadd.f32 0.0, %v213
    %v215 = vpop.f32.mrb[0].mxu0
    %216 = vmatprep.mubr.bf16.mxu0 0
    %217 = vmatmul.mubr.bf16.gmra.mrb[0].mxu0 %v85
    %v218 = vpop.f32.mrb[0].mxu0
    %v219 = vadd.f32 0.0, %v218
    %v220 = vpop.f32.mrb[0].mxu0
    %v221 = vpop.f32.mrb[0].mxu0
    %v222 = vadd.f32 0.0, %v221
    %v223 = vpop.f32.mrb[0].mxu0
    %224 = vmatprep.mubr.bf16.mxu0 0
    %225 = vmatmul.mubr.bf16.gmra.mrb[0].mxu0 %v86
    %v226 = vpop.f32.mrb[0].mxu0
    %v227 = vadd.f32 0.0, %v226
    %v228 = vpop.f32.mrb[0].mxu0
    %v229 = vpop.f32.mrb[0].mxu0
    %v230 = vadd.f32 0.0, %v229
    %v231 = vpop.f32.mrb[0].mxu0
    %232 = vmatprep.mubr.bf16.mxu0 0
    %233 = vmatmul.mubr.bf16.gmra.mrb[0].mxu0 %v87
    %v234 = vpop.f32.mrb[0].mxu0
    %v235 = vadd.f32 0.0, %v234
    %v236 = vpop.f32.mrb[0].mxu0
    %v237 = vpop.f32.mrb[0].mxu0
    %v238 = vadd.f32 0.0, %v237
    %v239 = vpop.f32.mrb[0].mxu0
    %240 = vdwg.mxu0
    %v241 = vld [vmem:[%s2] sm:$0xff]
    %v242 = vld [vmem:[%s2 + $0x8] sm:$0xff]
    %v243 = vld [vmem:[%s2 + $0x10] sm:$0xff]
    %v244 = vld [vmem:[%s2 + $0x18] sm:$0xff]
    %v245 = vld [vmem:[%s2 + $0x20] sm:$0xff]
    %v246 = vld [vmem:[%s2 + $0x28] sm:$0xff]
    %v247 = vld [vmem:[%s2 + $0x30] sm:$0xff]
    %v248 = vld [vmem:[%s2 + $0x38] sm:$0xff]
    %v249 = vld [vmem:[%s2 + $0x40] sm:$0xff]
    %v250 = vld [vmem:[%s2 + $0x48] sm:$0xff]
    %v251 = vld [vmem:[%s2 + $0x50] sm:$0xff]
    %v252 = vld [vmem:[%s2 + $0x58] sm:$0xff]
    %v253 = vld [vmem:[%s2 + $0x60] sm:$0xff]
    %v254 = vld [vmem:[%s2 + $0x68] sm:$0xff]
    %v255 = vld [vmem:[%s2 + $0x70] sm:$0xff]
    %v256 = vld [vmem:[%s2 + $0x78] sm:$0xff]
    %258 = vset.pattern.permute.xlu0 0
    %259 = vperm.xlu0 %258, %v241
    %v260 = vpop.permute.xlu0 %259
    %263 = vset.pattern.permute.xlu0 0
    %264 = vperm.xlu0 %263, %v242
    %v265 = vpop.permute.xlu0 %264
    %268 = vset.pattern.permute.xlu0 0
    %269 = vperm.xlu0 %268, %v243
    %v270 = vpop.permute.xlu0 %269
    %273 = vset.pattern.permute.xlu0 0
    %274 = vperm.xlu0 %273, %v244
    %v275 = vpop.permute.xlu0 %274
    %278 = vset.pattern.permute.xlu0 0
    %279 = vperm.xlu0 %278, %v245
    %v280 = vpop.permute.xlu0 %279
    %283 = vset.pattern.permute.xlu0 0
    %284 = vperm.xlu0 %283, %v246
    %v285 = vpop.permute.xlu0 %284
    %288 = vset.pattern.permute.xlu0 0
    %289 = vperm.xlu0 %288, %v247
    %v290 = vpop.permute.xlu0 %289
    %293 = vset.pattern.permute.xlu0 0
    %294 = vperm.xlu0 %293, %v248
    %v295 = vpop.permute.xlu0 %294
    %298 = vset.pattern.permute.xlu0 0
    %299 = vperm.xlu0 %298, %v249
    %v300 = vpop.permute.xlu0 %299
    %303 = vset.pattern.permute.xlu0 0
    %304 = vperm.xlu0 %303, %v250
    %v305 = vpop.permute.xlu0 %304
    %308 = vset.pattern.permute.xlu0 0
    %309 = vperm.xlu0 %308, %v251
    %v310 = vpop.permute.xlu0 %309
    %313 = vset.pattern.permute.xlu0 0
    %314 = vperm.xlu0 %313, %v252
    %v315 = vpop.permute.xlu0 %314
    %318 = vset.pattern.permute.xlu0 0
    %319 = vperm.xlu0 %318, %v253
    %v320 = vpop.permute.xlu0 %319
    %323 = vset.pattern.permute.xlu0 0
    %324 = vperm.xlu0 %323, %v254
    %v325 = vpop.permute.xlu0 %324
    %328 = vset.pattern.permute.xlu0 0
    %329 = vperm.xlu0 %328, %v255
    %v330 = vpop.permute.xlu0 %329
    %333 = vset.pattern.permute.xlu0 0
    %334 = vperm.xlu0 %333, %v256
    %v335 = vpop.permute.xlu0 %334
    %v337 = vmul.f32 %v179, %v260
    %v338 = vmul.f32 %v182, %v265
    %v339 = vmul.f32 %v187, %v270
    %v340 = vmul.f32 %v190, %v275
    %v341 = vmul.f32 %v195, %v280
    %v342 = vmul.f32 %v198, %v285
    %v343 = vmul.f32 %v203, %v290
    %v344 = vmul.f32 %v206, %v295
    %v345 = vmul.f32 %v211, %v300
    %v346 = vmul.f32 %v214, %v305
    %v347 = vmul.f32 %v219, %v310
    %v348 = vmul.f32 %v222, %v315
    %v349 = vmul.f32 %v227, %v320
    %v350 = vmul.f32 %v230, %v325
    %v351 = vmul.f32 %v235, %v330
    %v352 = vmul.f32 %v238, %v335
    %v353 = vpack.c.bf16 %v338, %v337
    %v354 = vpack.c.bf16 %v340, %v339
    %v355 = vpack.c.bf16 %v342, %v341
    %v356 = vpack.c.bf16 %v344, %v343
    %v357 = vpack.c.bf16 %v346, %v345
    %v358 = vpack.c.bf16 %v348, %v347
    %v359 = vpack.c.bf16 %v350, %v349
    %v360 = vpack.c.bf16 %v352, %v351
    %v369 = vunpack.c.l.b16 %v353
    %v370 = vunpack.c.h.b16 %v353
    %v371 = vunpack.c.l.b16 %v354
    %v372 = vunpack.c.h.b16 %v354
    %v373 = vunpack.c.l.b16 %v355
    %v374 = vunpack.c.h.b16 %v355
    %v375 = vunpack.c.l.b16 %v356
    %v376 = vunpack.c.h.b16 %v356
    %v377 = vunpack.c.l.b16 %v357
    %v378 = vunpack.c.h.b16 %v357
    %v379 = vunpack.c.l.b16 %v358
    %v380 = vunpack.c.h.b16 %v358
    %v381 = vunpack.c.l.b16 %v359
    %v382 = vunpack.c.h.b16 %v359
    %v383 = vunpack.c.l.b16 %v360
    %v384 = vunpack.c.h.b16 %v360
    %v385 = vpack.c.b16 %v369, %v369
    %v386 = vpack.c.b16 %v370, %v370
    %v387 = vpack.c.b16 %v371, %v371
    %v388 = vpack.c.b16 %v372, %v372
    %v389 = vpack.c.b16 %v373, %v373
    %v390 = vpack.c.b16 %v374, %v374
    %v391 = vpack.c.b16 %v375, %v375
    %v392 = vpack.c.b16 %v376, %v376
    %v393 = vpack.c.b16 %v377, %v377
    %v394 = vpack.c.b16 %v378, %v378
    %v395 = vpack.c.b16 %v379, %v379
    %v396 = vpack.c.b16 %v380, %v380
    %v397 = vpack.c.b16 %v381, %v381
    %v398 = vpack.c.b16 %v382, %v382
    %v399 = vpack.c.b16 %v383, %v383
    %v400 = vpack.c.b16 %v384, %v384
    %417 = vst [vmem:[#allocation2] sm:$0xf] %v385
    %418 = vst [vmem:[#allocation2 + $0x4] sm:$0xf] %v386
    %419 = vst [vmem:[#allocation2 + $0x8] sm:$0xf] %v387
    %420 = vst [vmem:[#allocation2 + $0xc] sm:$0xf] %v388
    %421 = vst [vmem:[#allocation2 + $0x10] sm:$0xf] %v389
    %422 = vst [vmem:[#allocation2 + $0x14] sm:$0xf] %v390
    %423 = vst [vmem:[#allocation2 + $0x18] sm:$0xf] %v391
    %424 = vst [vmem:[#allocation2 + $0x1c] sm:$0xf] %v392
    %425 = vst [vmem:[#allocation2 + $0x20] sm:$0xf] %v393
    %426 = vst [vmem:[#allocation2 + $0x24] sm:$0xf] %v394
    %427 = vst [vmem:[#allocation2 + $0x28] sm:$0xf] %v395
    %428 = vst [vmem:[#allocation2 + $0x2c] sm:$0xf] %v396
    %429 = vst [vmem:[#allocation2 + $0x30] sm:$0xf] %v397
    %430 = vst [vmem:[#allocation2 + $0x34] sm:$0xf] %v398
    %431 = vst [vmem:[#allocation2 + $0x38] sm:$0xf] %v399
    %432 = vst [vmem:[#allocation2 + $0x3c] sm:$0xf] %v400
    // Predicated region
    $region14: #{tpu_custom_call.1} parent=1 // pred_check
      _
    $region15: #{tpu_custom_call.1} parent=1 // pred_check_branch
      %434 = sbr.rel (0) target = $region17
    $region16: #{tpu_custom_call.1} parent=1 // pred_region
      %s436 = ssub.s32 1024, 1024
      %437 = vsyncadd [#allocation3], %s436
      %s438 = sshll.u32 [#allocation2], 4
      %s439 = int_to_ptr.vmem [resolvable:$true] %s438
      %444 = dma.vmem_to_hbm [thread:$0]  %s439, 1024, %s3, [#allocation3], 64, 64, 4
    $region17: #{tpu_custom_call.1} parent=1 // pred_fallthru
      _
    // Predicated region
    $region18: #{tpu_custom_call.1} parent=1 // pred_check
      _
    $region19: #{tpu_custom_call.1} parent=1 // pred_check_branch
      %446 = sbr.rel (0) target = $region21
    $region20: #{tpu_custom_call.1} parent=1 // pred_region
      %447 = dma.done [#allocation3], 1024
    $region21: #{tpu_custom_call.1} parent=1 // pred_fallthru
      _
    %448 = vsyncpa [#allocation3], 1

</llo_original>
